<compile_context>
chip_gen: v6e
topology: v6e:2x2x1
jax: 0.10.0
libtpu: 0.0.40
codegen_flags: <defaults>
</compile_context>

<pallas_src>
import math
import functools

import jax
import jax.numpy as jnp
from jax import lax
from jax.experimental import pallas as pl
from jax.experimental.pallas import tpu as pltpu


_MASK_VALUE = -0.7 * float(jnp.finfo(jnp.float32).max)   # finite "-inf"
_LN_EPS = 1e-5                                            # torch LayerNorm default


# ----------------------------- tiling / vmem helpers -----------------------------

def _round_up(x, m):
    return (x + m - 1) // m * m


def _par_tile(dim, target):
    """Tile for a parallel (row / q) dim: full extent when small, otherwise the
    aligned target with a ragged final block handled by a pl.cdiv grid."""
    return min(dim, target)


def _div_tile(dim, target, align):
    """Largest multiple of `align` that exactly divides `dim` and is <= target.
    Small dims use the full extent (always a legal block).  Exact division is
    required for contraction-style dims so padded garbage never enters an
    accumulation."""
    if dim <= target:
        return dim
    t = (target // align) * align
    while t >= align:
        if dim % t == 0:
            return t
        t -= align
    # TODO(synk): awkward dims with no aligned divisor fall back to the full
    # extent; handle with masked accumulation if this ever matters.
    return dim


def _block_bytes(shape, dtype):
    shape = list(shape)
    shape[-1] = _round_up(int(shape[-1]), 128)
    if len(shape) >= 2:
        shape[-2] = _round_up(int(shape[-2]), 8)
    n = 1
    for s in shape:
        n *= int(s)
    return n * jnp.dtype(dtype).itemsize


def _compiler_params(semantics, blocks, scratch=()):
    """dimension_semantics + vmem_limit derived from the double-buffered block
    footprint (2x margin, floor 32 MiB, cap 64 MiB so it is legal on v7x)."""
    total = 2 * sum(_block_bytes(s, d) for s, d in blocks)
    total += sum(_block_bytes(s, d) for s, d in scratch)
    limit = int(min(64 * 2**20, max(32 * 2**20, 2 * total)))
    return pltpu.CompilerParams(dimension_semantics=semantics,
                                vmem_limit_bytes=limit)


# ----------------------------- LayerNorm stats prepass -----------------------------

def _ln_stats_kernel(x_ref, mu_ref, rstd_ref):
    x = x_ref[...].astype(jnp.float32)
    mu = jnp.mean(x, axis=-1, keepdims=True)
    var = jnp.mean((x - mu) ** 2, axis=-1, keepdims=True)
    mu_ref[...] = mu
    rstd_ref[...] = lax.rsqrt(var + _LN_EPS)


def layernorm_stats(x, tm=256):
    """Per-row (mean, rstd) of x: computed once, re-used by every K tile of the
    fused LN+matmul kernel (so LN is never recomputed per output-column tile)."""
    n, d = x.shape
    tm = _par_tile(n, tm)
    blocks = [((tm, d), x.dtype), ((tm, 1), jnp.float32), ((tm, 1), jnp.float32)]
    return pl.pallas_call(
        _ln_stats_kernel,
        out_shape=(jax.ShapeDtypeStruct((n, 1), jnp.float32),
                   jax.ShapeDtypeStruct((n, 1), jnp.float32)),
        grid=(pl.cdiv(n, tm),),
        in_specs=[pl.BlockSpec((tm, d), lambda i: (i, 0))],
        out_specs=(pl.BlockSpec((tm, 1), lambda i: (i, 0)),
                   pl.BlockSpec((tm, 1), lambda i: (i, 0))),
        compiler_params=_compiler_params(("parallel",), blocks),
    )(x)


# ------------------- fused LayerNorm-apply + Linear (+GELU) -------------------

def _ln_linear_kernel(x_ref, mu_ref, rstd_ref, g_ref, b_ref, w_ref, bias_ref,
                      o_ref, acc_ref, *, activation):
    k = pl.program_id(2)

    @pl.when(k == 0)
    def _():
        acc_ref[...] = jnp.zeros_like(acc_ref)

    w = w_ref[...]
    w = w.reshape(w.shape[-2], w.shape[-1])          # drop leading 1 (split layout)
    x = x_ref[...].astype(jnp.float32)
    xn = (x - mu_ref[...]) * rstd_ref[...] * g_ref[...] + b_ref[...]
    acc_ref[...] += jnp.dot(xn.astype(w.dtype), w,   # bf16 MXU, f32 accumulate
                            preferred_element_type=jnp.float32)

    @pl.when(k == pl.num_programs(2) - 1)
    def _():
        bias = bias_ref[...].reshape(1, bias_ref.shape[-1]).astype(jnp.float32)
        y = acc_ref[...] + bias
        if activation == "gelu":
            # exact (erf) GELU, matching torch.nn.functional.gelu default
            y = 0.5 * y * (1.0 + lax.erf(y * (1.0 / math.sqrt(2.0))))
        o_ref[...] = y.reshape(o_ref.shape).astype(o_ref.dtype)


def ln_linear(x, mu, rstd, gamma, beta, w, bias, *, activation="none",
              out_split=1, out_dtype=jnp.bfloat16, tm=256, tn=256, tk=512):
    """y = layernorm(x; mu, rstd, gamma, beta) @ w + bias   [optional GELU]

    out_split == 1: w (K, Dout), bias (Dout,)  -> output (N, Dout)
    out_split == s: w (s, K, D), bias (s, 1, D) -> output (s, N, D)
    The split case routes output-column tiles into per-slab slabs purely via
    the out BlockSpec, so q/k/v come out pre-separated with no wrapper transpose."""
    n, kdim = x.shape
    if out_split == 1:
        kfull, d_slab = w.shape
        bias2 = bias.reshape(1, d_slab).astype(jnp.float32)
    else:
        assert w.ndim == 3 and w.shape[0] == out_split
        _, kfull, d_slab = w.shape
        bias2 = bias.reshape(out_split, 1, d_slab).astype(jnp.float32)
    assert kfull == kdim

    tm = _par_tile(n, tm)
    tk = _div_tile(kdim, tk, 128)
    tn = _div_tile(d_slab, tn, 128)
    jps = d_slab // tn                     # column tiles per output slab
    grid = (pl.cdiv(n, tm), out_split * jps, kdim // tk)

    if out_split == 1:
        w_block, bias_block, out_block = (tk, tn), (1, tn), (tm, tn)
        w_spec = pl.BlockSpec(w_block, lambda i, j, k: (k, j))
        bias_spec = pl.BlockSpec(bias_block, lambda i, j, k: (0, j))
        out_spec = pl.BlockSpec(out_block, lambda i, j, k: (i, j))
        out_shape = jax.ShapeDtypeStruct((n, d_slab), out_dtype)
    else:
        w_block, bias_block, out_block = (1, tk, tn), (1, 1, tn), (1, tm, tn)
        w_spec = pl.BlockSpec(w_block, lambda i, j, k: (j // jps, k, j % jps))
        bias_spec = pl.BlockSpec(bias_block, lambda i, j, k: (j // jps, 0, j % jps))
        out_spec = pl.BlockSpec(out_block, lambda i, j, k: (j // jps, i, j % jps))
        out_shape = jax.ShapeDtypeStruct((out_split, n, d_slab), out_dtype)

    blocks = [((tm, tk), x.dtype), ((tm, 1), jnp.float32), ((tm, 1), jnp.float32),
              ((1, tk), jnp.float32), ((1, tk), jnp.float32),
              (w_block, w.dtype), (bias_block, jnp.float32), (out_block, out_dtype)]
    scratch = [((tm, tn), jnp.float32)]

    return pl.pallas_call(
        functools.partial(_ln_linear_kernel, activation=activation),
        out_shape=out_shape,
        grid=grid,
        in_specs=[
            pl.BlockSpec((tm, tk), lambda i, j, k: (i, k)),
            pl.BlockSpec((tm, 1), lambda i, j, k: (i, 0)),
            pl.BlockSpec((tm, 1), lambda i, j, k: (i, 0)),
            pl.BlockSpec((1, tk), lambda i, j, k: (0, k)),
            pl.BlockSpec((1, tk), lambda i, j, k: (0, k)),
            w_spec,
            bias_spec,
        ],
        out_specs=out_spec,
        scratch_shapes=[pltpu.VMEM((tm, tn), jnp.float32)],
        compiler_params=_compiler_params(("parallel", "parallel", "arbitrary"),
                                         blocks, scratch),
    )(x, mu, rstd,
      gamma.reshape(1, kdim).astype(jnp.float32),
      beta.reshape(1, kdim).astype(jnp.float32),
      w, bias2)


# ------------------- Linear + bias + residual (K-tiled accumulator) -------------------

def _linear_residual_kernel(x_ref, w_ref, bias_ref, r_ref, o_ref, acc_ref):
    k = pl.program_id(2)

    @pl.when(k == 0)
    def _():
        acc_ref[...] = jnp.zeros_like(acc_ref)

    w = w_ref[...]
    acc_ref[...] += jnp.dot(x_ref[...].astype(w.dtype), w,
                            preferred_element_type=jnp.float32)

    @pl.when(k == pl.num_programs(2) - 1)
    def _():
        y = acc_ref[...] + bias_ref[...] + r_ref[...].astype(jnp.float32)
        o_ref[...] = y.astype(o_ref.dtype)


def linear_residual(x, w, bias, residual, *, tm=256, tn=256, tk=512):
    """y = residual + (x @ w + bias)   (bf16 matmul, f32 accumulate + residual)."""
    n, kdim = x.shape
    kfull, dout = w.shape
    assert kfull == kdim
    tm = _par_tile(n, tm)
    tn = _div_tile(dout, tn, 128)
    tk = _div_tile(kdim, tk, 128)
    grid = (pl.cdiv(n, tm), dout // tn, kdim // tk)

    blocks = [((tm, tk), x.dtype), ((tk, tn), w.dtype), ((1, tn), jnp.float32),
              ((tm, tn), residual.dtype), ((tm, tn), residual.dtype)]
    scratch = [((tm, tn), jnp.float32)]

    return pl.pallas_call(
        _linear_residual_kernel,
        out_shape=jax.ShapeDtypeStruct((n, dout), residual.dtype),
        grid=grid,
        in_specs=[
            pl.BlockSpec((tm, tk), lambda i, j, k: (i, k)),
            pl.BlockSpec((tk, tn), lambda i, j, k: (k, j)),
            pl.BlockSpec((1, tn), lambda i, j, k: (0, j)),
            pl.BlockSpec((tm, tn), lambda i, j, k: (i, j)),
        ],
        out_specs=pl.BlockSpec((tm, tn), lambda i, j, k: (i, j)),
        scratch_shapes=[pltpu.VMEM((tm, tn), jnp.float32)],
        compiler_params=_compiler_params(("parallel", "parallel", "arbitrary"),
                                         blocks, scratch),
    )(x, w, bias.reshape(1, dout).astype(jnp.float32), residual)


# ----------------------------- causal flash attention -----------------------------

def _attention_kernel(q_ref, k_ref, v_ref, o_ref, m_sc, l_sc, acc_sc, *,
                      nhead, scale):
    tq, dmod = q_ref.shape[2], q_ref.shape[3]
    tkv = k_ref.shape[2]
    hd = dmod // nhead
    qi = pl.program_id(1)
    kv = pl.program_id(2)

    @pl.when(kv == 0)
    def _():
        m_sc[...] = jnp.full_like(m_sc, _MASK_VALUE)
        l_sc[...] = jnp.zeros_like(l_sc)
        acc_sc[...] = jnp.zeros_like(acc_sc)

    # Skip KV tiles that are entirely in the causal future of this q tile.
    @pl.when(kv * tkv <= qi * tq + (tq - 1))
    def _():
        qq = q_ref[0, 0]                        # (tq, D)   bf16
        kk = k_ref[0, 0]                        # (tkv, D)  bf16
        vv = v_ref[0, 0]                        # (tkv, D)  bf16
        row = qi * tq + lax.broadcasted_iota(jnp.int32, (tq, tkv), 0)
        col = kv * tkv + lax.broadcasted_iota(jnp.int32, (tq, tkv), 1)
        keep = row >= col                       # causal (lower triangular)

        # TODO(synk): when head_dim >= 128, hoist heads to a grid axis with a
        # (B, H, T, hd) layout to avoid the per-head lane slices below.
        for h in range(nhead):                  # static python loop; nhead small
            sl = slice(h * hd, (h + 1) * hd)
            s = lax.dot_general(qq[:, sl], kk[:, sl], (((1,), (1,)), ((), ())),
                                preferred_element_type=jnp.float32)   # (tq, tkv)
            # reference scales by 1/sqrt(mod_dim), not 1/sqrt(head_dim)
            s = jnp.where(keep, s * scale, _MASK_VALUE)
            m_prev = m_sc[:, h:h + 1]
            m_new = jnp.maximum(m_prev, jnp.max(s, axis=-1, keepdims=True))
            alpha = jnp.exp(m_prev - m_new)
            p = jnp.exp(s - m_new)
            l_sc[:, h:h + 1] = alpha * l_sc[:, h:h + 1] + jnp.sum(
                p, axis=-1, keepdims=True)
            acc_sc[:, sl] = alpha * acc_sc[:, sl] + jnp.dot(
                p.astype(vv.dtype), vv[:, sl], preferred_element_type=jnp.float32)
            m_sc[:, h:h + 1] = m_new

    @pl.when(kv == pl.num_programs(2) - 1)
    def _():
        outs = [acc_sc[:, h * hd:(h + 1) * hd] / l_sc[:, h:h + 1]
                for h in range(nhead)]
        # single lane-dense (tq, D) store (heads concatenated along features)
        o_ref[0] = jnp.concatenate(outs, axis=-1).astype(o_ref.dtype)


def causal_attention(qkv, nhead, scale, *, tq=256, tkv=256):
    """qkv: (3, B, T, D) packed q/k/v slabs -> (B, T, D) attention output with
    heads concatenated along the feature dim (the layout out_lin expects)."""
    _, B, T, D = qkv.shape
    tq = _par_tile(T, tq)
    tkv = _div_tile(T, tkv, 8)
    grid = (B, pl.cdiv(T, tq), T // tkv)

    blocks = [((1, 1, tq, D), qkv.dtype), ((1, 1, tkv, D), qkv.dtype),
              ((1, 1, tkv, D), qkv.dtype), ((1, tq, D), qkv.dtype)]
    scratch = [((tq, nhead), jnp.float32), ((tq, nhead), jnp.float32),
               ((tq, D), jnp.float32)]

    kern = functools.partial(_attention_kernel, nhead=nhead, scale=scale)
    return pl.pallas_call(
        kern,
        out_shape=jax.ShapeDtypeStruct((B, T, D), qkv.dtype),
        grid=grid,
        in_specs=[
            pl.BlockSpec((1, 1, tq, D), lambda b, qi, kv: (0, b, qi, 0)),   # q slab
            pl.BlockSpec((1, 1, tkv, D), lambda b, qi, kv: (1, b, kv, 0)),  # k slab
            pl.BlockSpec((1, 1, tkv, D), lambda b, qi, kv: (2, b, kv, 0)),  # v slab
        ],
        out_specs=pl.BlockSpec((1, tq, D), lambda b, qi, kv: (b, qi, 0)),
        scratch_shapes=[pltpu.VMEM((tq, nhead), jnp.float32),
                        pltpu.VMEM((tq, nhead), jnp.float32),
                        pltpu.VMEM((tq, D), jnp.float32)],
        compiler_params=_compiler_params(("parallel", "parallel", "arbitrary"),
                                         blocks, scratch),
    )(qkv, qkv, qkv)


# ----------------------------- parameters -----------------------------

def init_params(key, cfg):
    D = cfg["mod_dim"]
    ks = jax.random.split(key, 4)

    def lin_w(k, fan_in, shape):
        bound = 1.0 / math.sqrt(fan_in)
        # stored (in, out) (transposed vs torch Linear.weight), bf16 for MXU/HBM
        return jax.random.uniform(k, shape, jnp.float32, -bound, bound).astype(
            jnp.bfloat16)

    return dict(
        ln1_g=jnp.ones((D,), jnp.float32), ln1_b=jnp.zeros((D,), jnp.float32),
        ln2_g=jnp.ones((D,), jnp.float32), ln2_b=jnp.zeros((D,), jnp.float32),
        attn_w=lin_w(ks[0], D, (3, D, D)),              # q|k|v slabs
        attn_b=jnp.zeros((3, 1, D), jnp.float32),
        attn_out_w=lin_w(ks[1], D, (D, D)),
        attn_out_b=jnp.zeros((D,), jnp.float32),
        mlp_hid_w=lin_w(ks[2], D, (D, 4 * D)),
        mlp_hid_b=jnp.zeros((4 * D,), jnp.float32),
        mlp_out_w=lin_w(ks[3], 4 * D, (4 * D, D)),
        mlp_out_b=jnp.zeros((D,), jnp.float32),
    )


# ----------------------------- forward pass -----------------------------

def transformer_block_forward(params, X, cfg):
    """X: (bsz, T, mod_dim) -> (bsz, T, mod_dim), matching TransformerBlock.forward."""
    B, T, D = X.shape
    H = cfg["nhead"]
    assert D == cfg["mod_dim"] and D % H == 0 and T <= cfg["context_length"]

    # NOTE: reference scales attention by 1/sqrt(mod_dim), not 1/sqrt(head_dim)
    scale = 1.0 / math.sqrt(D)

    X2 = X.reshape(B * T, D)                                         # f32 residual stream

    # --- attention sublayer: Z = X + out_lin(attn(norm1(X))) ---
    mu1, rstd1 = layernorm_stats(X2)
    qkv = ln_linear(X2, mu1, rstd1, params["ln1_g"], params["ln1_b"],
                    params["attn_w"], params["attn_b"],
                    out_split=3, out_dtype=jnp.bfloat16)             # (3, B*T, D)
    att = causal_attention(qkv.reshape(3, B, T, D), H, scale)        # (B, T, D) bf16
    Z2 = linear_residual(att.reshape(B * T, D),
                         params["attn_out_w"], params["attn_out_b"], X2)   # f32

    # --- MLP sublayer: Y = Z + out_lin(gelu(hid_lin(norm2(Z)))) ---
    mu2, rstd2 = layernorm_stats(Z2)
    h = ln_linear(Z2, mu2, rstd2, params["ln2_g"], params["ln2_b"],
                  params["mlp_hid_w"], params["mlp_hid_b"],
                  activation="gelu", out_dtype=jnp.bfloat16)         # (B*T, 4D) bf16
    Y2 = linear_residual(h, params["mlp_out_w"], params["mlp_out_b"], Z2)   # f32

    return Y2.reshape(B, T, D)


# ----------------------------- main -----------------------------

if __name__ == "__main__":
    cfg = dict(mod_dim=32, nhead=4, context_length=16, bias=True, dropout=0.0)

    key = jax.random.PRNGKey(0)
    k_params, k_x = jax.random.split(key)
    params = init_params(k_params, cfg)

    B, T = 2, 8
    X = jax.random.normal(k_x, (B, T, cfg["mod_dim"]), jnp.float32)

    Y = transformer_block_forward(params, X, cfg)
    Y = jax.block_until_ready(Y)

    assert Y.shape == (B, T, cfg["mod_dim"])
    assert bool(jnp.all(jnp.isfinite(Y)))
    print("KERNEL_OK")
</pallas_src>

<mosaic_0001>
module attributes {stable_mosaic.version = 11 : i64} {
  func.func @_ln_stats_kernel(%arg0: i32, %arg1: memref<16x32xf32, #tpu.memory_space<vmem>>, %arg2: memref<16x1xf32, #tpu.memory_space<vmem>>, %arg3: memref<16x1xf32, #tpu.memory_space<vmem>>) attributes {dimension_semantics = [#tpu.dimension_semantics<parallel>], iteration_bounds = array<i64: 1>, scalar_prefetch = 0 : i64, scratch_operands = 0 : i64, tpu.core_type = #tpu.core_type<tc>, window_params = [{transform_indices = @transform_0, window_bounds = array<i64: 16, 32>}, {transform_indices = @transform_1, window_bounds = array<i64: 16, 1>}, {transform_indices = @transform_2, window_bounds = array<i64: 16, 1>}]} {
    %c0 = arith.constant 0 : index
    %c0_0 = arith.constant 0 : index
    %0 = vector.load %arg1[%c0, %c0_0] : memref<16x32xf32, #tpu.memory_space<vmem>>, vector<16x32xf32>
    %cst = arith.constant dense<0.000000e+00> : vector<16xf32>
    %1 = vector.multi_reduction <add>, %0, %cst [1] : vector<16x32xf32> to vector<16xf32>
    %2 = vector.shape_cast %1 : vector<16xf32> to vector<16x1xf32>
    %cst_1 = arith.constant 3.200000e+01 : f32
    %3 = vector.broadcast %cst_1 : f32 to vector<16x1xf32>
    %4 = arith.divf %2, %3 : vector<16x1xf32>
    %5 = vector.broadcast %4 : vector<16x1xf32> to vector<16x32xf32>
    %6 = arith.subf %0, %5 : vector<16x32xf32>
    %7 = arith.mulf %6, %6 : vector<16x32xf32>
    %cst_2 = arith.constant dense<0.000000e+00> : vector<16xf32>
    %8 = vector.multi_reduction <add>, %7, %cst_2 [1] : vector<16x32xf32> to vector<16xf32>
    %9 = vector.shape_cast %8 : vector<16xf32> to vector<16x1xf32>
    %cst_3 = arith.constant 3.200000e+01 : f32
    %10 = vector.broadcast %cst_3 : f32 to vector<16x1xf32>
    %11 = arith.divf %9, %10 : vector<16x1xf32>
    %c0_4 = arith.constant 0 : index
    %c0_5 = arith.constant 0 : index
    %12 = vector.load %arg2[%c0_4, %c0_5] : memref<16x1xf32, #tpu.memory_space<vmem>>, vector<16x1xf32>
    tpu.vector_store %arg2[%c0_4, %c0_5], %4 {strides = array<i32>} : memref<16x1xf32, #tpu.memory_space<vmem>>, vector<16x1xf32>,
    %cst_6 = arith.constant 9.99999974E-6 : f32
    %13 = vector.broadcast %cst_6 : f32 to vector<16x1xf32>
    %14 = arith.addf %11, %13 : vector<16x1xf32>
    %15 = math.rsqrt %14 : vector<16x1xf32>
    %c0_7 = arith.constant 0 : index
    %c0_8 = arith.constant 0 : index
    %16 = vector.load %arg3[%c0_7, %c0_8] : memref<16x1xf32, #tpu.memory_space<vmem>>, vector<16x1xf32>
    tpu.vector_store %arg3[%c0_7, %c0_8], %15 {strides = array<i32>} : memref<16x1xf32, #tpu.memory_space<vmem>>, vector<16x1xf32>,
    return
  }
  func.func @transform_0(%arg0: i32) -> (i32, i32) {
    %c0_i32 = arith.constant 0 : i32
    %c0_i32_0 = arith.constant 0 : i32
    return %arg0, %c0_i32 : i32, i32
  }
  func.func @transform_1(%arg0: i32) -> (i32, i32) {
    %c0_i32 = arith.constant 0 : i32
    %c0_i32_0 = arith.constant 0 : i32
    return %arg0, %c0_i32 : i32, i32
  }
  func.func @transform_2(%arg0: i32) -> (i32, i32) {
    %c0_i32 = arith.constant 0 : i32
    %c0_i32_0 = arith.constant 0 : i32
    return %arg0, %c0_i32 : i32, i32
  }
}

</mosaic_0001>

<llo_original>
// kernel: tpu_custom_call.1
$region0: #{tpu_custom_call.1}
  #allocation0 [shape = 'u32[]', space=smem, size = 0x4, offset = 0x4, fixed_abs, tag = 'smem constant byte address 0x4 - core index']
  #allocation1 [shape = 'u32[144,128]{1,0:T(1,128)}', space=vmem, size = 0x12000, scoped, tag = 'internal scratch']
  %s0 = inlined_call_operand.hbm [shape: f32[16,32], index: 0, kind: input, shape index: {}]
  %s1 = inlined_call_operand.vmem [shape: f32[16,1], index: 1, kind: output, shape index: {0}]
  %s2 = inlined_call_operand.vmem [shape: f32[16,1], index: 2, kind: output, shape index: {1}]
  %3 = xla_tuple %s1, %s2
  %s4 = sld [smem:[#allocation0]]
  $region26: #{tpu_custom_call.1} parent=0
    _
  %s6 = ssub.s32 1, %s4
  %s7 = scalar_select 0, %s6, %s4
  $region1: #{tpu_custom_call.1} parent=0
    #allocation2 [shape = 'u8[8192]{0}', space=vmem, size = 0x2000, scoped, tag = 'input window, operand 0, single buffered']
    #allocation3 [shape = 's32[1]{0}', space=sflag, size = 0x4, scoped, tag = 'scoped memory for tpu_custom_call.1']
    %8 = vsyncpa [#allocation3], 0
    // Predicated region
    $region2: #{tpu_custom_call.1} parent=1 // pred_check
      _
    $region3: #{tpu_custom_call.1} parent=1 // pred_check_branch
      %10 = sbr.rel (0) target = $region5
    $region4: #{tpu_custom_call.1} parent=1 // pred_region
      %s12 = ssub.s32 256, 256
      %13 = vsyncadd [#allocation3], %s12
      %s14 = sshll.u32 [#allocation2], 4
      %s15 = int_to_ptr.vmem [resolvable:$true] %s14
      %20 = dma.hbm_to_vmem [thread:$0]  %s0, 256, %s15, [#allocation3], 128, 128, 8
    $region5: #{tpu_custom_call.1} parent=1 // pred_fallthru
      _
    // Predicated region
    $region6: #{tpu_custom_call.1} parent=1 // pred_check
      _
    $region7: #{tpu_custom_call.1} parent=1 // pred_check_branch
      %22 = sbr.rel (0) target = $region9
    $region8: #{tpu_custom_call.1} parent=1 // pred_region
      %23 = dma.done [#allocation3], 256
    $region9: #{tpu_custom_call.1} parent=1 // pred_fallthru
      _
    %v24 = vld [vmem:[#allocation2] sm:$0xff]
    %v25 = vld [vmem:[#allocation2 + $0x8] sm:$0xff]
    %vm26 = vcmask 261120
    %v27 = vsel %vm26, %v24, 0.0
    %28 = vadd.xlane.f32.xlu0 %v27
    %v29 = vpop.xlane.xlu0 %28
    %v30 = vsel %vm26, %v25, 0.0
    %31 = vadd.xlane.f32.xlu0 %v30
    %v32 = vpop.xlane.xlu0 %31
    %v33 = vrcp.pop 32.0
    %v34 = vmul.f32 %v29, %v33
    %v35 = vmul.f32 %v32, %v33
    %v36 = vsub.f32 %v24, %v34
    %v37 = vsub.f32 %v25, %v35
    %v38 = vmul.f32 %v36, %v36
    %v39 = vmul.f32 %v37, %v37
    %v40 = vsel %vm26, %v38, 0.0
    %41 = vadd.xlane.f32.xlu0 %v40
    %v42 = vpop.xlane.xlu0 %41
    %v43 = vsel %vm26, %v39, 0.0
    %44 = vadd.xlane.f32.xlu0 %v43
    %v45 = vpop.xlane.xlu0 %44
    %v46 = vmul.f32 %v42, %v33
    %v47 = vmul.f32 %v45, %v33
    %vm48 = vcmask 7168
    %49 = vst.msk [vmem:[%s1] sm:$0xff] %vm48, %v34
    %50 = vst.msk [vmem:[%s1 + $0x8] sm:$0xff] %vm48, %v35
    %v51 = vadd.f32 %v46, 1e-05
    %v52 = vadd.f32 %v47, 1e-05
    %v53 = vrsqrt.pop %v51
    %v54 = vrsqrt.pop %v52
    %55 = vst.msk [vmem:[%s2] sm:$0xff] %vm48, %v53
    %56 = vst.msk [vmem:[%s2 + $0x8] sm:$0xff] %vm48, %v54
    // Predicated region
    $region10: #{tpu_custom_call.1} parent=1 // pred_check
      _
    $region11: #{tpu_custom_call.1} parent=1 // pred_check_branch
      %58 = sbr.rel (0) target = $region13
    $region12: #{tpu_custom_call.1} parent=1 // pred_region
      _
    $region13: #{tpu_custom_call.1} parent=1 // pred_fallthru
      _
    // Predicated region
    $region14: #{tpu_custom_call.1} parent=1 // pred_check
      _
    $region15: #{tpu_custom_call.1} parent=1 // pred_check_branch
      %60 = sbr.rel (0) target = $region17
    $region16: #{tpu_custom_call.1} parent=1 // pred_region
      _
    $region17: #{tpu_custom_call.1} parent=1 // pred_fallthru
      _
    // Predicated region
    $region18: #{tpu_custom_call.1} parent=1 // pred_check
      _
    $region19: #{tpu_custom_call.1} parent=1 // pred_check_branch
      %62 = sbr.rel (0) target = $region21
    $region20: #{tpu_custom_call.1} parent=1 // pred_region
      _
    $region21: #{tpu_custom_call.1} parent=1 // pred_fallthru
      _
    // Predicated region
    $region22: #{tpu_custom_call.1} parent=1 // pred_check
      _
    $region23: #{tpu_custom_call.1} parent=1 // pred_check_branch
      %64 = sbr.rel (0) target = $region25
    $region24: #{tpu_custom_call.1} parent=1 // pred_region
      _
    $region25: #{tpu_custom_call.1} parent=1 // pred_fallthru
      _
    %65 = vsyncpa [#allocation3], 1

</llo_original>
